<compile_context>
chip_gen: v5e
topology: v5e:2x2
jax: 0.10.0
libtpu: 0.0.40
codegen_flags: <defaults>
</compile_context>

<pallas_src>
import jax
import jax.numpy as jnp
from jax.experimental import pallas as pl
from jax.experimental.pallas import tpu as pltpu

EPS = 1e-5          # nn.BatchNorm2d default eps
LANE = 128
SUBLANE = 8
TM_MAX = 512        # M-tile rows


def conv2d_size_out(size, kernel_size=5, stride=2):
    return (size - (kernel_size - 1) - 1) // stride + 1


def _round_up(x, m):
    return ((x + m - 1) // m) * m


# ----------------------------- Pallas kernels ------------------------------ #

def _matmul_stats_kernel(x_ref, w_ref, y_ref, s1_ref, s2_ref):
    """bf16 matmul (f32 accumulate) + per-channel sum / sum-of-squares."""
    i = pl.program_id(0)

    @pl.when(i == 0)
    def _():
        s1_ref[...] = jnp.zeros_like(s1_ref)
        s2_ref[...] = jnp.zeros_like(s2_ref)

    acc = jnp.dot(x_ref[...], w_ref[...], preferred_element_type=jnp.float32)
    y_ref[...] = acc
    # Padded rows / channels are exactly zero (no conv bias), so they add nothing.
    s1_ref[...] += jnp.sum(acc, axis=0, keepdims=True)
    s2_ref[...] += jnp.sum(acc * acc, axis=0, keepdims=True)


def _scale_shift_relu_kernel(y_ref, scale_ref, shift_ref, o_ref):
    """BatchNorm apply (precomputed per-channel scale/shift) + ReLU, f32 math."""
    y = y_ref[...] * scale_ref[...] + shift_ref[...]
    o_ref[...] = jnp.maximum(y, 0.0).astype(o_ref.dtype)


def _linear_kernel(x_ref, w_ref, b_ref, o_ref):
    o_ref[...] = (
        jnp.dot(x_ref[...], w_ref[...], preferred_element_type=jnp.float32)
        + b_ref[...]
    )


# ------------------------------ layer wrappers ----------------------------- #

def conv_bn_relu(x_nhwc, weight, gamma, beta, stride=2):
    """Conv2d(k=5,s=2,no pad, bias cancelled by BN) + BatchNorm2d(batch stats) + ReLU.

    Input/output are NHWC. `weight` is PyTorch layout (Cout, Cin, KH, KW).
    """
    N, H, W, C = x_nhwc.shape
    Cout, Cin, KH, KW = weight.shape
    assert Cin == C
    OH = (H - KH) // stride + 1
    OW = (W - KW) // stride + 1
    M = N * OH * OW
    K = KH * KW * C

    # --- im2col from NHWC, feature order (kh, kw, cin) ---
    # TODO(synk): move patch extraction into the Pallas kernel (strided pl.ds reads
    # from a VMEM-resident input tile) to avoid materializing the 25x-expanded
    # patch matrix in HBM.
    cols = []
    for kh in range(KH):
        for kw in range(KW):
            cols.append(
                x_nhwc[:, kh:kh + stride * (OH - 1) + 1:stride,
                          kw:kw + stride * (OW - 1) + 1:stride, :]
            )
    patches = jnp.stack(cols, axis=3)          # (N, OH, OW, KH*KW, C)
    patches = patches.reshape(M, K)

    # weight flattened to match (kh, kw, cin) patch order -> (K, Cout)
    w2 = weight.transpose(2, 3, 1, 0).reshape(K, Cout)

    # --- pad lanes to 128 and rows to the M tile ---
    Kp = _round_up(K, LANE)
    Cp = _round_up(Cout, LANE)
    TM = min(TM_MAX, _round_up(M, SUBLANE))
    Mp = _round_up(M, TM)
    n_tiles = Mp // TM

    patches = jnp.pad(patches, ((0, Mp - M), (0, Kp - K))).astype(jnp.bfloat16)
    w2 = jnp.pad(w2, ((0, Kp - K), (0, Cp - Cout))).astype(jnp.bfloat16)

    # Pass 1: tiled matmul + BN statistics (sum, sum of squares).
    y, s1, s2 = pl.pallas_call(
        _matmul_stats_kernel,
        out_shape=(
            jax.ShapeDtypeStruct((Mp, Cp), jnp.float32),
            jax.ShapeDtypeStruct((1, Cp), jnp.float32),
            jax.ShapeDtypeStruct((1, Cp), jnp.float32),
        ),
        grid=(n_tiles,),
        in_specs=[
            pl.BlockSpec((TM, Kp), lambda i: (i, 0)),
            pl.BlockSpec((Kp, Cp), lambda i: (0, 0)),
        ],
        out_specs=(
            pl.BlockSpec((TM, Cp), lambda i: (i, 0)),
            pl.BlockSpec((1, Cp), lambda i: (0, 0)),
            pl.BlockSpec((1, Cp), lambda i: (0, 0)),
        ),
        compiler_params=pltpu.CompilerParams(dimension_semantics=("arbitrary",)),
    )(patches, w2)

    # Batch statistics (biased variance, PyTorch train-mode normalization).
    inv_m = 1.0 / float(M)
    mean = s1 * inv_m
    var = jnp.maximum(s2 * inv_m - mean * mean, 0.0)
    gamma_p = jnp.pad(gamma, (0, Cp - Cout)).reshape(1, Cp).astype(jnp.float32)
    beta_p = jnp.pad(beta, (0, Cp - Cout)).reshape(1, Cp).astype(jnp.float32)
    scale = gamma_p * jax.lax.rsqrt(var + EPS)
    shift = beta_p - mean * scale

    # Pass 2: normalize + ReLU, tiled over M, parallel across cores.
    out = pl.pallas_call(
        _scale_shift_relu_kernel,
        out_shape=jax.ShapeDtypeStruct((Mp, Cp), jnp.bfloat16),
        grid=(n_tiles,),
        in_specs=[
            pl.BlockSpec((TM, Cp), lambda i: (i, 0)),
            pl.BlockSpec((1, Cp), lambda i: (0, 0)),
            pl.BlockSpec((1, Cp), lambda i: (0, 0)),
        ],
        out_specs=pl.BlockSpec((TM, Cp), lambda i: (i, 0)),
        compiler_params=pltpu.CompilerParams(dimension_semantics=("parallel",)),
    )(y, scale, shift)

    return out[:M, :Cout].reshape(N, OH, OW, Cout)   # stays NHWC


def linear_head(x, weight, bias):
    """x: (N, F), weight: (O, F) PyTorch layout, bias: (O,). Returns f32 (N, O)."""
    N, F = x.shape
    O = weight.shape[0]
    Fp = _round_up(F, LANE)
    Op = _round_up(O, LANE)

    xp = jnp.pad(x, ((0, 0), (0, Fp - F))).astype(jnp.bfloat16)
    wp = jnp.pad(weight.T.astype(jnp.float32),
                 ((0, Fp - F), (0, Op - O))).astype(jnp.bfloat16)
    bp = jnp.pad(bias, (0, Op - O)).reshape(1, Op).astype(jnp.float32)

    out = pl.pallas_call(
        _linear_kernel,
        out_shape=jax.ShapeDtypeStruct((N, Op), jnp.float32),
        grid=(1,),
        in_specs=[
            pl.BlockSpec((N, Fp), lambda i: (0, 0)),
            pl.BlockSpec((Fp, Op), lambda i: (0, 0)),
            pl.BlockSpec((1, Op), lambda i: (0, 0)),
        ],
        out_specs=pl.BlockSpec((N, Op), lambda i: (0, 0)),
        compiler_params=pltpu.CompilerParams(dimension_semantics=("arbitrary",)),
    )(xp, wp, bp)
    return out[:, :O]


# ------------------------------- DQN forward ------------------------------- #

def init_dqn_params(key, h, w, outputs):
    convw = conv2d_size_out(conv2d_size_out(conv2d_size_out(w)))
    convh = conv2d_size_out(conv2d_size_out(conv2d_size_out(h)))
    linear_input_size = convw * convh * 32

    keys = jax.random.split(key, 8)
    p = {}
    p["conv1_w"] = 0.05 * jax.random.normal(keys[0], (16, 3, 5, 5), jnp.float32)
    p["conv1_b"] = 0.05 * jax.random.normal(keys[1], (16,), jnp.float32)
    p["conv2_w"] = 0.05 * jax.random.normal(keys[2], (32, 16, 5, 5), jnp.float32)
    p["conv2_b"] = 0.05 * jax.random.normal(keys[3], (32,), jnp.float32)
    p["conv3_w"] = 0.05 * jax.random.normal(keys[4], (32, 32, 5, 5), jnp.float32)
    p["conv3_b"] = 0.05 * jax.random.normal(keys[5], (32,), jnp.float32)
    # BatchNorm2d default init: weight(gamma)=1, bias(beta)=0
    p["bn1_g"], p["bn1_b"] = jnp.ones((16,), jnp.float32), jnp.zeros((16,), jnp.float32)
    p["bn2_g"], p["bn2_b"] = jnp.ones((32,), jnp.float32), jnp.zeros((32,), jnp.float32)
    p["bn3_g"], p["bn3_b"] = jnp.ones((32,), jnp.float32), jnp.zeros((32,), jnp.float32)
    p["head_w"] = 0.05 * jax.random.normal(keys[6], (outputs, linear_input_size), jnp.float32)
    p["head_b"] = 0.05 * jax.random.normal(keys[7], (outputs,), jnp.float32)
    return p


def dqn_forward(params, x_nchw):
    # conv biases (conv{1,2,3}_b) are mathematically cancelled by the following
    # BatchNorm mean subtraction, so they are not applied (exact same output).
    x = jnp.transpose(x_nchw, (0, 2, 3, 1))          # NCHW -> NHWC once
    x = conv_bn_relu(x, params["conv1_w"], params["bn1_g"], params["bn1_b"])
    x = conv_bn_relu(x, params["conv2_w"], params["bn2_g"], params["bn2_b"])
    x = conv_bn_relu(x, params["conv3_w"], params["bn3_g"], params["bn3_b"])
    # flatten in PyTorch's NCHW .view(N, -1) order: (c, oh, ow)
    N = x.shape[0]
    x = jnp.transpose(x, (0, 3, 1, 2)).reshape(N, -1)
    return linear_head(x, params["head_w"], params["head_b"])


if __name__ == "__main__":
    # 3 conv(k=5, s=2) layers require spatial >= 29; use 32x32 RGB frames,
    # batch=2, 4 actions.
    H, W, OUTPUTS, BATCH = 32, 32, 4, 2

    key = jax.random.PRNGKey(0)
    kx, kp = jax.random.split(key)
    x = jax.random.normal(kx, (BATCH, 3, H, W), jnp.float32)
    params = init_dqn_params(kp, H, W, OUTPUTS)

    q = dqn_forward(params, x)
    q = jax.block_until_ready(q)

    assert q.shape == (BATCH, OUTPUTS), q.shape
    assert bool(jnp.all(jnp.isfinite(q)))
    print("KERNEL_OK")
</pallas_src>

<mosaic_0001>
module attributes {stable_mosaic.version = 11 : i64} {
  func.func @_matmul_stats_kernel(%arg0: i32, %arg1: memref<392x128xbf16, #tpu.memory_space<vmem>>, %arg2: memref<128x128xbf16, #tpu.memory_space<vmem>>, %arg3: memref<392x128xf32, #tpu.memory_space<vmem>>, %arg4: memref<1x128xf32, #tpu.memory_space<vmem>>, %arg5: memref<1x128xf32, #tpu.memory_space<vmem>>) attributes {dimension_semantics = [#tpu.dimension_semantics<arbitrary>], iteration_bounds = array<i64: 1>, scalar_prefetch = 0 : i64, scratch_operands = 0 : i64, tpu.core_type = #tpu.core_type<tc>, window_params = [{transform_indices = @transform_0, window_bounds = array<i64: 392, 128>}, {pipeline_mode = #tpu.pipeline_mode<synchronous>, transform_indices = @transform_1, window_bounds = array<i64: 128, 128>}, {transform_indices = @transform_2, window_bounds = array<i64: 392, 128>}, {pipeline_mode = #tpu.pipeline_mode<synchronous>, transform_indices = @transform_3, window_bounds = array<i64: 1, 128>}, {pipeline_mode = #tpu.pipeline_mode<synchronous>, transform_indices = @transform_4, window_bounds = array<i64: 1, 128>}]} {
    %c0_i32 = arith.constant 0 : i32
    %0 = arith.cmpi eq, %arg0, %c0_i32 : i32
    %1 = arith.extui %0 : i1 to i32
    %c0_i32_0 = arith.constant 0 : i32
    %2 = arith.cmpi ne, %1, %c0_i32_0 : i32
    scf.if %2 {
      %cst_16 = arith.constant 0.000000e+00 : f32
      %18 = vector.broadcast %cst_16 : f32 to vector<1x128xf32>
      %c0_17 = arith.constant 0 : index
      %c0_18 = arith.constant 0 : index
      %19 = vector.load %arg4[%c0_17, %c0_18] : memref<1x128xf32, #tpu.memory_space<vmem>>, vector<1x128xf32>
      tpu.vector_store %arg4[%c0_17, %c0_18], %18 {strides = array<i32>} : memref<1x128xf32, #tpu.memory_space<vmem>>, vector<1x128xf32>,
      %cst_19 = arith.constant 0.000000e+00 : f32
      %20 = vector.broadcast %cst_19 : f32 to vector<1x128xf32>
      %c0_20 = arith.constant 0 : index
      %c0_21 = arith.constant 0 : index
      %21 = vector.load %arg5[%c0_20, %c0_21] : memref<1x128xf32, #tpu.memory_space<vmem>>, vector<1x128xf32>
      tpu.vector_store %arg5[%c0_20, %c0_21], %20 {strides = array<i32>} : memref<1x128xf32, #tpu.memory_space<vmem>>, vector<1x128xf32>,
    } else {
    }
    %c0 = arith.constant 0 : index
    %c0_1 = arith.constant 0 : index
    %3 = vector.load %arg1[%c0, %c0_1] : memref<392x128xbf16, #tpu.memory_space<vmem>>, vector<392x128xbf16>
    %c0_2 = arith.constant 0 : index
    %c0_3 = arith.constant 0 : index
    %4 = vector.load %arg2[%c0_2, %c0_3] : memref<128x128xbf16, #tpu.memory_space<vmem>>, vector<128x128xbf16>
    %cst = arith.constant dense<0.000000e+00> : vector<392x128xf32>
    %5 = tpu.matmul %3, %4, %cst {dimension_numbers = #tpu.dot_dimension_numbers<[1], [0], [0], [1], [0, 0, 1, 1], [], []>} : vector<392x128xbf16>, vector<128x128xbf16>, vector<392x128xf32> -> vector<392x128xf32>
    %c0_4 = arith.constant 0 : index
    %c0_5 = arith.constant 0 : index
    %6 = vector.load %arg3[%c0_4, %c0_5] : memref<392x128xf32, #tpu.memory_space<vmem>>, vector<392x128xf32>
    tpu.vector_store %arg3[%c0_4, %c0_5], %5 {strides = array<i32>} : memref<392x128xf32, #tpu.memory_space<vmem>>, vector<392x128xf32>,
    %c0_6 = arith.constant 0 : index
    %c0_7 = arith.constant 0 : index
    %7 = vector.load %arg4[%c0_6, %c0_7] : memref<1x128xf32, #tpu.memory_space<vmem>>, vector<1x128xf32>
    %cst_8 = arith.constant dense<0.000000e+00> : vector<128xf32>
    %8 = vector.multi_reduction <add>, %5, %cst_8 [0] : vector<392x128xf32> to vector<128xf32>
    %9 = vector.shape_cast %8 : vector<128xf32> to vector<1x128xf32>
    %10 = arith.addf %7, %9 : vector<1x128xf32>
    %c0_9 = arith.constant 0 : index
    %c0_10 = arith.constant 0 : index
    %11 = vector.load %arg4[%c0_9, %c0_10] : memref<1x128xf32, #tpu.memory_space<vmem>>, vector<1x128xf32>
    tpu.vector_store %arg4[%c0_9, %c0_10], %10 {strides = array<i32>} : memref<1x128xf32, #tpu.memory_space<vmem>>, vector<1x128xf32>,
    %c0_11 = arith.constant 0 : index
    %c0_12 = arith.constant 0 : index
    %12 = vector.load %arg5[%c0_11, %c0_12] : memref<1x128xf32, #tpu.memory_space<vmem>>, vector<1x128xf32>
    %13 = arith.mulf %5, %5 : vector<392x128xf32>
    %cst_13 = arith.constant dense<0.000000e+00> : vector<128xf32>
    %14 = vector.multi_reduction <add>, %13, %cst_13 [0] : vector<392x128xf32> to vector<128xf32>
    %15 = vector.shape_cast %14 : vector<128xf32> to vector<1x128xf32>
    %16 = arith.addf %12, %15 : vector<1x128xf32>
    %c0_14 = arith.constant 0 : index
    %c0_15 = arith.constant 0 : index
    %17 = vector.load %arg5[%c0_14, %c0_15] : memref<1x128xf32, #tpu.memory_space<vmem>>, vector<1x128xf32>
    tpu.vector_store %arg5[%c0_14, %c0_15], %16 {strides = array<i32>} : memref<1x128xf32, #tpu.memory_space<vmem>>, vector<1x128xf32>,
    return
  }
  func.func @transform_0(%arg0: i32) -> (i32, i32) {
    %c0_i32 = arith.constant 0 : i32
    %c0_i32_0 = arith.constant 0 : i32
    return %arg0, %c0_i32 : i32, i32
  }
  func.func @transform_1(%arg0: i32) -> (i32, i32) {
    %c0_i32 = arith.constant 0 : i32
    %c0_i32_0 = arith.constant 0 : i32
    %c0_i32_1 = arith.constant 0 : i32
    return %c0_i32, %c0_i32_0 : i32, i32
  }
  func.func @transform_2(%arg0: i32) -> (i32, i32) {
    %c0_i32 = arith.constant 0 : i32
    %c0_i32_0 = arith.constant 0 : i32
    return %arg0, %c0_i32 : i32, i32
  }
  func.func @transform_3(%arg0: i32) -> (i32, i32) {
    %c0_i32 = arith.constant 0 : i32
    %c0_i32_0 = arith.constant 0 : i32
    %c0_i32_1 = arith.constant 0 : i32
    return %c0_i32, %c0_i32_0 : i32, i32
  }
  func.func @transform_4(%arg0: i32) -> (i32, i32) {
    %c0_i32 = arith.constant 0 : i32
    %c0_i32_0 = arith.constant 0 : i32
    %c0_i32_1 = arith.constant 0 : i32
    return %c0_i32, %c0_i32_0 : i32, i32
  }
}

</mosaic_0001>

<llo_original>
// kernel: tpu_custom_call.1
$region0: #{tpu_custom_call.1}
  #allocation0 [shape = 'u32[]', space=smem, size = 0x4, offset = 0x4, fixed_abs, tag = 'smem constant byte address 0x4 - core index']
  #allocation1 [shape = 'u32[72,128]{1,0:T(1,128)}', space=vmem, size = 0x9000, scoped, tag = 'internal scratch']
  %s0 = inlined_call_operand.hbm [shape: bf16[392,128], index: 0, kind: input, shape index: {}]
  %s1 = inlined_call_operand.hbm [shape: bf16[128,128], index: 1, kind: input, shape index: {}]
  %s2 = inlined_call_operand.hbm [shape: f32[392,128], index: 2, kind: output, shape index: {0}]
  %s3 = inlined_call_operand.hbm [shape: f32[1,128], index: 3, kind: output, shape index: {1}]
  %s4 = inlined_call_operand.hbm [shape: f32[1,128], index: 4, kind: output, shape index: {2}]
  %5 = xla_tuple %s2, %s3, %s4
  %s6 = sld [smem:[#allocation0]]
  $region46: #{tpu_custom_call.1} parent=0
    _
  %s8 = ssub.s32 1, %s6
  %s9 = scalar_select 0, %s8, %s6
  $region1: #{tpu_custom_call.1} parent=0
    #allocation2 [shape = 'u8[100352]{0}', space=vmem, size = 0x18800, scoped, tag = 'input window, operand 0, single buffered']
    #allocation3 [shape = 's32[1]{0}', space=sflag, size = 0x4, scoped, tag = 'scoped memory for tpu_custom_call.1']
    #allocation4 [shape = 's32[1]{0}', space=sflag, size = 0x4, scoped, tag = 'scoped memory for tpu_custom_call.1']
    #allocation5 [shape = 'u8[32768]{0}', space=vmem, size = 0x8000, scoped, tag = 'input window, operand 1, single buffered']
    #allocation6 [shape = 's32[1]{0}', space=sflag, size = 0x4, scoped, tag = 'scoped memory for tpu_custom_call.1']
    #allocation7 [shape = 'u8[200704]{0}', space=vmem, size = 0x31000, scoped, tag = 'output window, operand 0, single buffered']
    #allocation8 [shape = 'u8[512]{0}', space=vmem, size = 0x400, scoped, tag = 'output window, operand 1, single buffered']
    #allocation9 [shape = 's32[1]{0}', space=sflag, size = 0x4, scoped, tag = 'scoped memory for tpu_custom_call.1']
    #allocation10 [shape = 'u8[512]{0}', space=vmem, size = 0x400, scoped, tag = 'output window, operand 2, single buffered']
    %10 = vsyncpa [#allocation3], 0
    %11 = vsyncpa [#allocation6], 0
    %12 = vsyncpa [#allocation4], 0
    %13 = vsyncpa [#allocation9], 0
    // Predicated region
    $region2: #{tpu_custom_call.1} parent=1 // pred_check
      _
    $region3: #{tpu_custom_call.1} parent=1 // pred_check_branch
      %15 = sbr.rel (0) target = $region5
    $region4: #{tpu_custom_call.1} parent=1 // pred_region
      %17 = vsyncadd [#allocation3], 0
      %s18 = sshll.u32 %s0, 4
      %s19 = int_to_ptr.hbm [resolvable:$true] %s18
      %s20 = sshll.u32 [#allocation2], 4
      %s21 = int_to_ptr.vmem [resolvable:$true] %s20
      %26 = dma.hbm_to_vmem [thread:$0]  %s19, 3136, %s21, [#allocation3], 64, 64, 4
    $region5: #{tpu_custom_call.1} parent=1 // pred_fallthru
      _
    // Predicated region
    $region6: #{tpu_custom_call.1} parent=1 // pred_check
      _
    $region7: #{tpu_custom_call.1} parent=1 // pred_check_branch
      %28 = sbr.rel (0) target = $region9
    $region8: #{tpu_custom_call.1} parent=1 // pred_region
      %30 = vsyncadd [#allocation6], 0
      %s31 = sshll.u32 %s1, 4
      %s32 = int_to_ptr.hbm [resolvable:$true] %s31
      %s33 = sshll.u32 [#allocation5], 4
      %s34 = int_to_ptr.vmem [resolvable:$true] %s33
      %39 = dma.hbm_to_vmem [thread:$0]  %s32, 1024, %s34, [#allocation6], 64, 64, 4
    $region9: #{tpu_custom_call.1} parent=1 // pred_fallthru
      _
    // Predicated region
    $region10: #{tpu_custom_call.1} parent=1 // pred_check
      _
    $region11: #{tpu_custom_call.1} parent=1 // pred_check_branch
      %41 = sbr.rel (0) target = $region13
    $region12: #{tpu_custom_call.1} parent=1 // pred_region
      %43 = dma.done [#allocation3], 3136
    $region13: #{tpu_custom_call.1} parent=1 // pred_fallthru
      _
    // Predicated region
    $region14: #{tpu_custom_call.1} parent=1 // pred_check
      _
    $region15: #{tpu_custom_call.1} parent=1 // pred_check_branch
      %45 = sbr.rel (0) target = $region17
    $region16: #{tpu_custom_call.1} parent=1 // pred_region
      %47 = dma.done [#allocation6], 1024
    $region17: #{tpu_custom_call.1} parent=1 // pred_fallthru
      _
    %p48 = scmp.eq.s32.totalorder 0, 0
    // Predicated region
    $region18: #{tpu_custom_call.1} parent=1 // pred_check
      %p49 = pneg %p48
    $region19: #{tpu_custom_call.1} parent=1 // pred_check_branch
      %51 = sbr.rel (%p49) target = $region21
    $region20: #{tpu_custom_call.1} parent=1 // pred_region
      %52 = vst [vmem:[#allocation8] sm:$0x1] 0.0
      %53 = vst [vmem:[#allocation10] sm:$0x1] 0.0
    $region21: #{tpu_custom_call.1} parent=1 // pred_fallthru
      _
    %v54 = vld [vmem:[#allocation2] sm:$0xf]
    %v55 = vld [vmem:[#allocation2 + $0x4] sm:$0xf]
    %v56 = vld [vmem:[#allocation2 + $0x8] sm:$0xf]
    %v57 = vld [vmem:[#allocation2 + $0xc] sm:$0xf]
    %v58 = vld [vmem:[#allocation2 + $0x10] sm:$0xf]
    %v59 = vld [vmem:[#allocation2 + $0x14] sm:$0xf]
    %v60 = vld [vmem:[#allocation2 + $0x18] sm:$0xf]
    %v61 = vld [vmem:[#allocation2 + $0x1c] sm:$0xf]
    %v62 = vld [vmem:[#allocation2 + $0x20] sm:$0xf]
    %v63 = vld [vmem:[#allocation2 + $0x24] sm:$0xf]
    %v64 = vld [vmem:[#allocation2 + $0x28] sm:$0xf]
    %v65 = vld [vmem:[#allocation2 + $0x2c] sm:$0xf]
    %v66 = vld [vmem:[#allocation2 + $0x30] sm:$0xf]
    %v67 = vld [vmem:[#allocation2 + $0x34] sm:$0xf]
    %v68 = vld [vmem:[#allocation2 + $0x38] sm:$0xf]
    %v69 = vld [vmem:[#allocation2 + $0x3c] sm:$0xf]
    %v70 = vld [vmem:[#allocation2 + $0x40] sm:$0xf]
    %v71 = vld [vmem:[#allocation2 + $0x44] sm:$0xf]
    %v72 = vld [vmem:[#allocation2 + $0x48] sm:$0xf]
    %v73 = vld [vmem:[#allocation2 + $0x4c] sm:$0xf]
    %v74 = vld [vmem:[#allocation2 + $0x50] sm:$0xf]
    %v75 = vld [vmem:[#allocation2 + $0x54] sm:$0xf]
    %v76 = vld [vmem:[#allocation2 + $0x58] sm:$0xf]
    %v77 = vld [vmem:[#allocation2 + $0x5c] sm:$0xf]
    %v78 = vld [vmem:[#allocation2 + $0x60] sm:$0xf]
    %v79 = vld [vmem:[#allocation2 + $0x64] sm:$0xf]
    %v80 = vld [vmem:[#allocation2 + $0x68] sm:$0xf]
    %v81 = vld [vmem:[#allocation2 + $0x6c] sm:$0xf]
    %v82 = vld [vmem:[#allocation2 + $0x70] sm:$0xf]
    %v83 = vld [vmem:[#allocation2 + $0x74] sm:$0xf]
    %v84 = vld [vmem:[#allocation2 + $0x78] sm:$0xf]
    %v85 = vld [vmem:[#allocation2 + $0x7c] sm:$0xf]
    %v86 = vld [vmem:[#allocation2 + $0x80] sm:$0xf]
    %v87 = vld [vmem:[#allocation2 + $0x84] sm:$0xf]
    %v88 = vld [vmem:[#allocation2 + $0x88] sm:$0xf]
    %v89 = vld [vmem:[#allocation2 + $0x8c] sm:$0xf]
    %v90 = vld [vmem:[#allocation2 + $0x90] sm:$0xf]
    %v91 = vld [vmem:[#allocation2 + $0x94] sm:$0xf]
    %v92 = vld [vmem:[#allocation2 + $0x98] sm:$0xf]
    %v93 = vld [vmem:[#allocation2 + $0x9c] sm:$0xf]
    %v94 = vld [vmem:[#allocation2 + $0xa0] sm:$0xf]
    %v95 = vld [vmem:[#allocation2 + $0xa4] sm:$0xf]
    %v96 = vld [vmem:[#allocation2 + $0xa8] sm:$0xf]
    %v97 = vld [vmem:[#allocation2 + $0xac] sm:$0xf]
    %v98 = vld [vmem:[#allocation2 + $0xb0] sm:$0xf]
    %v99 = vld [vmem:[#allocation2 + $0xb4] sm:$0xf]
    %v100 = vld [vmem:[#allocation2 + $0xb8] sm:$0xf]
    %v101 = vld [vmem:[#allocation2 + $0xbc] sm:$0xf]
    %v102 = vld [vmem:[#allocation2 + $0xc0] sm:$0xf]
    %v103 = vld [vmem:[#allocation5] sm:$0xf]
    %v104 = vld [vmem:[#allocation5 + $0x4] sm:$0xf]
    %v105 = vld [vmem:[#allocation5 + $0x8] sm:$0xf]
    %v106 = vld [vmem:[#allocation5 + $0xc] sm:$0xf]
    %v107 = vld [vmem:[#allocation5 + $0x10] sm:$0xf]
    %v108 = vld [vmem:[#allocation5 + $0x14] sm:$0xf]
    %v109 = vld [vmem:[#allocation5 + $0x18] sm:$0xf]
    %v110 = vld [vmem:[#allocation5 + $0x1c] sm:$0xf]
    %v111 = vld [vmem:[#allocation5 + $0x20] sm:$0xf]
    %v112 = vld [vmem:[#allocation5 + $0x24] sm:$0xf]
    %v113 = vld [vmem:[#allocation5 + $0x28] sm:$0xf]
    %v114 = vld [vmem:[#allocation5 + $0x2c] sm:$0xf]
    %v115 = vld [vmem:[#allocation5 + $0x30] sm:$0xf]
    %v116 = vld [vmem:[#allocation5 + $0x34] sm:$0xf]
    %v117 = vld [vmem:[#allocation5 + $0x38] sm:$0xf]
    %v118 = vld [vmem:[#allocation5 + $0x3c] sm:$0xf]
    %v168 = vunpack.c.l.b16 %v54
    %v169 = vunpack.c.l.b16 %v55
    %v170 = vunpack.c.l.b16 %v56
    %v171 = vunpack.c.l.b16 %v57
    %v172 = vunpack.c.l.b16 %v58
    %v173 = vunpack.c.l.b16 %v59
    %v174 = vunpack.c.l.b16 %v60
    %v175 = vunpack.c.l.b16 %v61
    %v176 = vunpack.c.l.b16 %v62
    %v177 = vunpack.c.l.b16 %v63
    %v178 = vunpack.c.l.b16 %v64
    %v179 = vunpack.c.l.b16 %v65
    %v180 = vunpack.c.l.b16 %v66
    %v181 = vunpack.c.l.b16 %v67
    %v182 = vunpack.c.l.b16 %v68
    %v183 = vunpack.c.l.b16 %v69
    %v184 = vunpack.c.l.b16 %v70
    %v185 = vunpack.c.l.b16 %v71
    %v186 = vunpack.c.l.b16 %v72
    %v187 = vunpack.c.l.b16 %v73
    %v188 = vunpack.c.l.b16 %v74
    %v189 = vunpack.c.l.b16 %v75
    %v190 = vunpack.c.l.b16 %v76
    %v191 = vunpack.c.l.b16 %v77
    %v192 = vunpack.c.l.b16 %v78
    %v193 = vunpack.c.l.b16 %v79
    %v194 = vunpack.c.l.b16 %v80
    %v195 = vunpack.c.l.b16 %v81
    %v196 = vunpack.c.l.b16 %v82
    %v197 = vunpack.c.l.b16 %v83
    %v198 = vunpack.c.l.b16 %v84
    %v199 = vunpack.c.l.b16 %v85
    %v200 = vunpack.c.l.b16 %v86
    %v201 = vunpack.c.l.b16 %v87
    %v202 = vunpack.c.l.b16 %v88
    %v203 = vunpack.c.l.b16 %v89
    %v204 = vunpack.c.l.b16 %v90
    %v205 = vunpack.c.l.b16 %v91
    %v206 = vunpack.c.l.b16 %v92
    %v207 = vunpack.c.l.b16 %v93
    %v208 = vunpack.c.l.b16 %v94
    %v209 = vunpack.c.l.b16 %v95
    %v210 = vunpack.c.l.b16 %v96
    %v211 = vunpack.c.l.b16 %v97
    %v212 = vunpack.c.l.b16 %v98
    %v213 = vunpack.c.l.b16 %v99
    %v214 = vunpack.c.l.b16 %v100
    %v215 = vunpack.c.l.b16 %v101
    %v216 = vunpack.c.l.b16 %v102
    %v217 = vpack.c.b16 %v169, %v168
    %v218 = vpack.c.b16 %v171, %v170
    %v219 = vpack.c.b16 %v173, %v172
    %v220 = vpack.c.b16 %v175, %v174
    %v221 = vpack.c.b16 %v177, %v176
    %v222 = vpack.c.b16 %v179, %v178
    %v223 = vpack.c.b16 %v181, %v180
    %v224 = vpack.c.b16 %v183, %v182
    %v225 = vpack.c.b16 %v185, %v184
    %v226 = vpack.c.b16 %v187, %v186
    %v227 = vpack.c.b16 %v189, %v188
    %v228 = vpack.c.b16 %v191, %v190
    %v229 = vpack.c.b16 %v193, %v192
    %v230 = vpack.c.b16 %v195, %v194
    %v231 = vpack.c.b16 %v197, %v196
    %v232 = vpack.c.b16 %v199, %v198
    %v233 = vpack.c.b16 %v201, %v200
    %v234 = vpack.c.b16 %v203, %v202
    %v235 = vpack.c.b16 %v205, %v204
    %v236 = vpack.c.b16 %v207, %v206
    %v237 = vpack.c.b16 %v209, %v208
    %v238 = vpack.c.b16 %v211, %v210
    %v239 = vpack.c.b16 %v213, %v212
    %v240 = vpack.c.b16 %v215, %v214
    %v241 = vpack.c.b16 %v216, %v216
    %v283 = vunpack.c.l.b16 %v103
    %v284 = vunpack.c.l.b16 %v104
    %v285 = vunpack.c.l.b16 %v105
    %v286 = vunpack.c.l.b16 %v106
    %v287 = vunpack.c.l.b16 %v107
    %v288 = vunpack.c.l.b16 %v108
    %v289 = vunpack.c.l.b16 %v109
    %v290 = vunpack.c.l.b16 %v110
    %v291 = vunpack.c.l.b16 %v111
    %v292 = vunpack.c.l.b16 %v112
    %v293 = vunpack.c.l.b16 %v113
    %v294 = vunpack.c.l.b16 %v114
    %v295 = vunpack.c.l.b16 %v115
    %v296 = vunpack.c.l.b16 %v116
    %v297 = vunpack.c.l.b16 %v117
    %v298 = vunpack.c.l.b16 %v118
    %v299 = vpack.c.b16 %v284, %v283
    %v300 = vpack.c.b16 %v286, %v285
    %v301 = vpack.c.b16 %v288, %v287
    %v302 = vpack.c.b16 %v290, %v289
    %v303 = vpack.c.b16 %v292, %v291
    %v304 = vpack.c.b16 %v294, %v293
    %v305 = vpack.c.b16 %v296, %v295
    %v306 = vpack.c.b16 %v298, %v297
    %315 = vmatpush.bf16.msra.mxu0 %v306
    %316 = vmatpush.bf16.msra.mxu0 %v305
    %317 = vmatpush.bf16.msra.mxu0 %v304
    %318 = vmatpush.bf16.msra.mxu0 %v303
    %319 = vmatpush.bf16.msra.mxu0 %v302
    %320 = vmatpush.bf16.msra.mxu0 %v301
    %321 = vmatpush.bf16.msra.mxu0 %v300
    %322 = vmatpush.bf16.msra.mxu0 %v299
    %323 = vmatmul.bf16.gmra.mxu0 %v217
    %v324 = vpop.f32.mrf.mxu0
    %v325 = vadd.f32 0.0, %v324
    %v326 = vpop.f32.mrf.mxu0
    %v327 = vadd.f32 0.0, %v326
    %328 = vmatmul.bf16.gmra.mxu0 %v218
    %v329 = vpop.f32.mrf.mxu0
    %v330 = vadd.f32 0.0, %v329
    %v331 = vpop.f32.mrf.mxu0
    %v332 = vadd.f32 0.0, %v331
    %333 = vmatmul.bf16.gmra.mxu0 %v219
    %v334 = vpop.f32.mrf.mxu0
    %v335 = vadd.f32 0.0, %v334
    %v336 = vpop.f32.mrf.mxu0
    %v337 = vadd.f32 0.0, %v336
    %338 = vmatmul.bf16.gmra.mxu0 %v220
    %v339 = vpop.f32.mrf.mxu0
    %v340 = vadd.f32 0.0, %v339
    %v341 = vpop.f32.mrf.mxu0
    %v342 = vadd.f32 0.0, %v341
    %343 = vmatmul.bf16.gmra.mxu0 %v221
    %v344 = vpop.f32.mrf.mxu0
    %v345 = vadd.f32 0.0, %v344
    %v346 = vpop.f32.mrf.mxu0
    %v347 = vadd.f32 0.0, %v346
    %348 = vmatmul.bf16.gmra.mxu0 %v222
    %v349 = vpop.f32.mrf.mxu0
    %v350 = vadd.f32 0.0, %v349
    %v351 = vpop.f32.mrf.mxu0
    %v352 = vadd.f32 0.0, %v351
    %353 = vmatmul.bf16.gmra.mxu0 %v223
    %v354 = vpop.f32.mrf.mxu0
    %v355 = vadd.f32 0.0, %v354
    %v356 = vpop.f32.mrf.mxu0
    %v357 = vadd.f32 0.0, %v356
    %358 = vmatmul.bf16.gmra.mxu0 %v224
    %v359 = vpop.f32.mrf.mxu0
    %v360 = vadd.f32 0.0, %v359
    %v361 = vpop.f32.mrf.mxu0
    %v362 = vadd.f32 0.0, %v361
    %363 = vmatmul.bf16.gmra.mxu0 %v225
    %v364 = vpop.f32.mrf.mxu0
    %v365 = vadd.f32 0.0, %v364
    %v366 = vpop.f32.mrf.mxu0
    %v367 = vadd.f32 0.0, %v366
    %368 = vmatmul.bf16.gmra.mxu0 %v226
    %v369 = vpop.f32.mrf.mxu0
    %v370 = vadd.f32 0.0, %v369
    %v371 = vpop.f32.mrf.mxu0
    %v372 = vadd.f32 0.0, %v371
    %373 = vmatmul.bf16.gmra.mxu0 %v227
    %v374 = vpop.f32.mrf.mxu0
    %v375 = vadd.f32 0.0, %v374
    %v376 = vpop.f32.mrf.mxu0
    %v377 = vadd.f32 0.0, %v376
    %378 = vmatmul.bf16.gmra.mxu0 %v228
    %v379 = vpop.f32.mrf.mxu0
    %v380 = vadd.f32 0.0, %v379
    %v381 = vpop.f32.mrf.mxu0
    %v382 = vadd.f32 0.0, %v381
    %383 = vmatmul.bf16.gmra.mxu0 %v229
    %v384 = vpop.f32.mrf.mxu0
    %v385 = vadd.f32 0.0, %v384
    %v386 = vpop.f32.mrf.mxu0
    %v387 = vadd.f32 0.0, %v386
    %388 = vmatmul.bf16.gmra.mxu0 %v230
    %v389 = vpop.f32.mrf.mxu0
    %v390 = vadd.f32 0.0, %v389
    %v391 = vpop.f32.mrf.mxu0
    %v392 = vadd.f32 0.0, %v391
    %393 = vmatmul.bf16.gmra.mxu0 %v231
    %v394 = vpop.f32.mrf.mxu0
    %v395 = vadd.f32 0.0, %v394
    %v396 = vpop.f32.mrf.mxu0
    %v397 = vadd.f32 0.0, %v396
    %398 = vmatmul.bf16.gmra.mxu0 %v232
    %v399 = vpop.f32.mrf.mxu0
    %v400 = vadd.f32 0.0, %v399
    %v401 = vpop.f32.mrf.mxu0
    %v402 = vadd.f32 0.0, %v401
    %403 = vmatmul.bf16.gmra.mxu0 %v233
    %v404 = vpop.f32.mrf.mxu0
    %v405 = vadd.f32 0.0, %v404
    %v406 = vpop.f32.mrf.mxu0
    %v407 = vadd.f32 0.0, %v406
    %408 = vmatmul.bf16.gmra.mxu0 %v234
    %v409 = vpop.f32.mrf.mxu0
    %v410 = vadd.f32 0.0, %v409
    %v411 = vpop.f32.mrf.mxu0
    %v412 = vadd.f32 0.0, %v411
    %413 = vmatmul.bf16.gmra.mxu0 %v235
    %v414 = vpop.f32.mrf.mxu0
    %v415 = vadd.f32 0.0, %v414
    %v416 = vpop.f32.mrf.mxu0
    %v417 = vadd.f32 0.0, %v416
    %418 = vmatmul.bf16.gmra.mxu0 %v236
    %v419 = vpop.f32.mrf.mxu0
    %v420 = vadd.f32 0.0, %v419
    %v421 = vpop.f32.mrf.mxu0
    %v422 = vadd.f32 0.0, %v421
    %423 = vmatmul.bf16.gmra.mxu0 %v237
    %v424 = vpop.f32.mrf.mxu0
    %v425 = vadd.f32 0.0, %v424
    %v426 = vpop.f32.mrf.mxu0
    %v427 = vadd.f32 0.0, %v426
    %428 = vmatmul.bf16.gmra.mxu0 %v238
    %v429 = vpop.f32.mrf.mxu0
    %v430 = vadd.f32 0.0, %v429
    %v431 = vpop.f32.mrf.mxu0
    %v432 = vadd.f32 0.0, %v431
    %433 = vmatmul.bf16.gmra.mxu0 %v239
    %v434 = vpop.f32.mrf.mxu0
    %v435 = vadd.f32 0.0, %v434
    %v436 = vpop.f32.mrf.mxu0
    %v437 = vadd.f32 0.0, %v436
    %438 = vmatmul.bf16.gmra.mxu0 %v240
    %v439 = vpop.f32.mrf.mxu0
    %v440 = vadd.f32 0.0, %v439
    %v441 = vpop.f32.mrf.mxu0
    %v442 = vadd.f32 0.0, %v441
    %443 = vmatmul.bf16.gmra.mxu0 %v241
    %v444 = vpop.f32.mrf.mxu0
    %v445 = vadd.f32 0.0, %v444
    %v446 = vpop.f32.mrf.mxu0
    %447 = vdwg.mxu0
    %448 = vst [vmem:[#allocation7] sm:$0xff] %v325
    %449 = vst [vmem:[#allocation7 + $0x8] sm:$0xff] %v327
    %450 = vst [vmem:[#allocation7 + $0x10] sm:$0xff] %v330
    %451 = vst [vmem:[#allocation7 + $0x18] sm:$0xff] %v332
    %452 = vst [vmem:[#allocation7 + $0x20] sm:$0xff] %v335
    %453 = vst [vmem:[#allocation7 + $0x28] sm:$0xff] %v337
    %454 = vst [vmem:[#allocation7 + $0x30] sm:$0xff] %v340
    %455 = vst [vmem:[#allocation7 + $0x38] sm:$0xff] %v342
    %456 = vst [vmem:[#allocation7 + $0x40] sm:$0xff] %v345
    %457 = vst [vmem:[#allocation7 + $0x48] sm:$0xff] %v347
    %458 = vst [vmem:[#allocation7 + $0x50] sm:$0xff] %v350
    %459 = vst [vmem:[#allocation7 + $0x58] sm:$0xff] %v352
    %460 = vst [vmem:[#allocation7 + $0x60] sm:$0xff] %v355
    %461 = vst [vmem:[#allocation7 + $0x68] sm:$0xff] %v357
    %462 = vst [vmem:[#allocation7 + $0x70] sm:$0xff] %v360
    %463 = vst [vmem:[#allocation7 + $0x78] sm:$0xff] %v362
    %464 = vst [vmem:[#allocation7 + $0x80] sm:$0xff] %v365
    %465 = vst [vmem:[#allocation7 + $0x88] sm:$0xff] %v367
    %466 = vst [vmem:[#allocation7 + $0x90] sm:$0xff] %v370
    %467 = vst [vmem:[#allocation7 + $0x98] sm:$0xff] %v372
    %468 = vst [vmem:[#allocation7 + $0xa0] sm:$0xff] %v375
    %469 = vst [vmem:[#allocation7 + $0xa8] sm:$0xff] %v377
    %470 = vst [vmem:[#allocation7 + $0xb0] sm:$0xff] %v380
    %471 = vst [vmem:[#allocation7 + $0xb8] sm:$0xff] %v382
    %472 = vst [vmem:[#allocation7 + $0xc0] sm:$0xff] %v385
    %473 = vst [vmem:[#allocation7 + $0xc8] sm:$0xff] %v387
    %474 = vst [vmem:[#allocation7 + $0xd0] sm:$0xff] %v390
    %475 = vst [vmem:[#allocation7 + $0xd8] sm:$0xff] %v392
    %476 = vst [vmem:[#allocation7 + $0xe0] sm:$0xff] %v395
    %477 = vst [vmem:[#allocation7 + $0xe8] sm:$0xff] %v397
    %478 = vst [vmem:[#allocation7 + $0xf0] sm:$0xff] %v400
    %479 = vst [vmem:[#allocation7 + $0xf8] sm:$0xff] %v402
    %480 = vst [vmem:[#allocation7 + $0x100] sm:$0xff] %v405
    %481 = vst [vmem:[#allocation7 + $0x108] sm:$0xff] %v407
    %482 = vst [vmem:[#allocation7 + $0x110] sm:$0xff] %v410
    %483 = vst [vmem:[#allocation7 + $0x118] sm:$0xff] %v412
    %484 = vst [vmem:[#allocation7 + $0x120] sm:$0xff] %v415
    %485 = vst [vmem:[#allocation7 + $0x128] sm:$0xff] %v417
    %486 = vst [vmem:[#allocation7 + $0x130] sm:$0xff] %v420
    %487 = vst [vmem:[#allocation7 + $0x138] sm:$0xff] %v422
    %488 = vst [vmem:[#allocation7 + $0x140] sm:$0xff] %v425
    %489 = vst [vmem:[#allocation7 + $0x148] sm:$0xff] %v427
    %490 = vst [vmem:[#allocation7 + $0x150] sm:$0xff] %v430
    %491 = vst [vmem:[#allocation7 + $0x158] sm:$0xff] %v432
    %492 = vst [vmem:[#allocation7 + $0x160] sm:$0xff] %v435
    %493 = vst [vmem:[#allocation7 + $0x168] sm:$0xff] %v437
    %494 = vst [vmem:[#allocation7 + $0x170] sm:$0xff] %v440
    %495 = vst [vmem:[#allocation7 + $0x178] sm:$0xff] %v442
    %496 = vst [vmem:[#allocation7 + $0x180] sm:$0xff] %v445
    %v497 = vld [vmem:[#allocation8] sm:$0x1]
    %v498 = vadd.f32 %v325, %v327
    %v499 = vadd.f32 %v498, %v330
    %v500 = vadd.f32 %v499, %v332
    %v501 = vadd.f32 %v500, %v335
    %v502 = vadd.f32 %v501, %v337
    %v503 = vadd.f32 %v502, %v340
    %v504 = vadd.f32 %v503, %v342
    %v505 = vadd.f32 %v504, %v345
    %v506 = vadd.f32 %v505, %v347
    %v507 = vadd.f32 %v506, %v350
    %v508 = vadd.f32 %v507, %v352
    %v509 = vadd.f32 %v508, %v355
    %v510 = vadd.f32 %v509, %v357
    %v511 = vadd.f32 %v510, %v360
    %v512 = vadd.f32 %v511, %v362
    %v513 = vadd.f32 %v512, %v365
    %v514 = vadd.f32 %v513, %v367
    %v515 = vadd.f32 %v514, %v370
    %v516 = vadd.f32 %v515, %v372
    %v517 = vadd.f32 %v516, %v375
    %v518 = vadd.f32 %v517, %v377
    %v519 = vadd.f32 %v518, %v380
    %v520 = vadd.f32 %v519, %v382
    %v521 = vadd.f32 %v520, %v385
    %v522 = vadd.f32 %v521, %v387
    %v523 = vadd.f32 %v522, %v390
    %v524 = vadd.f32 %v523, %v392
    %v525 = vadd.f32 %v524, %v395
    %v526 = vadd.f32 %v525, %v397
    %v527 = vadd.f32 %v526, %v400
    %v528 = vadd.f32 %v527, %v402
    %v529 = vadd.f32 %v528, %v405
    %v530 = vadd.f32 %v529, %v407
    %v531 = vadd.f32 %v530, %v410
    %v532 = vadd.f32 %v531, %v412
    %v533 = vadd.f32 %v532, %v415
    %v534 = vadd.f32 %v533, %v417
    %v535 = vadd.f32 %v534, %v420
    %v536 = vadd.f32 %v535, %v422
    %v537 = vadd.f32 %v536, %v425
    %v538 = vadd.f32 %v537, %v427
    %v539 = vadd.f32 %v538, %v430
    %v540 = vadd.f32 %v539, %v432
    %v541 = vadd.f32 %v540, %v435
    %v542 = vadd.f32 %v541, %v437
    %v543 = vadd.f32 %v542, %v440
    %v544 = vadd.f32 %v543, %v442
    %v545 = vadd.f32 %v544, %v445
    %v546 = vrot.slane %v545, 4
    %v547 = vadd.f32 %v545, %v546
    %v548 = vrot.slane %v547, 2
    %v549 = vadd.f32 %v547, %v548
    %v550 = vrot.slane %v549, 1
    %v551 = vadd.f32 %v549, %v550
    %v552 = vadd.f32 %v497, %v551
    %553 = vst [vmem:[#allocation8] sm:$0x1] %v552
    %v554 = vld [vmem:[#allocation10] sm:$0x1]
    %v555 = vmul.f32 %v325, %v325
    %v556 = vmul.f32 %v327, %v327
    %v557 = vmul.f32 %v330, %v330
    %v558 = vmul.f32 %v332, %v332
    %v559 = vmul.f32 %v335, %v335
    %v560 = vmul.f32 %v337, %v337
    %v561 = vmul.f32 %v340, %v340
    %v562 = vmul.f32 %v342, %v342
    %v563 = vmul.f32 %v345, %v345
    %v564 = vmul.f32 %v347, %v347
    %v565 = vmul.f32 %v350, %v350
    %v566 = vmul.f32 %v352, %v352
    %v567 = vmul.f32 %v355, %v355
    %v568 = vmul.f32 %v357, %v357
    %v569 = vmul.f32 %v360, %v360
    %v570 = vmul.f32 %v362, %v362
    %v571 = vmul.f32 %v365, %v365
    %v572 = vmul.f32 %v367, %v367
    %v573 = vmul.f32 %v370, %v370
    %v574 = vmul.f32 %v372, %v372
    %v575 = vmul.f32 %v375, %v375
    %v576 = vmul.f32 %v377, %v377
    %v577 = vmul.f32 %v380, %v380
    %v578 = vmul.f32 %v382, %v382
    %v579 = vmul.f32 %v385, %v385
    %v580 = vmul.f32 %v387, %v387
    %v581 = vmul.f32 %v390, %v390
    %v582 = vmul.f32 %v392, %v392
    %v583 = vmul.f32 %v395, %v395
    %v584 = vmul.f32 %v397, %v397
    %v585 = vmul.f32 %v400, %v400
    %v586 = vmul.f32 %v402, %v402
    %v587 = vmul.f32 %v405, %v405
    %v588 = vmul.f32 %v407, %v407
    %v589 = vmul.f32 %v410, %v410
    %v590 = vmul.f32 %v412, %v412
    %v591 = vmul.f32 %v415, %v415
    %v592 = vmul.f32 %v417, %v417
    %v593 = vmul.f32 %v420, %v420
    %v594 = vmul.f32 %v422, %v422
    %v595 = vmul.f32 %v425, %v425
    %v596 = vmul.f32 %v427, %v427
    %v597 = vmul.f32 %v430, %v430
    %v598 = vmul.f32 %v432, %v432
    %v599 = vmul.f32 %v435, %v435
    %v600 = vmul.f32 %v437, %v437
    %v601 = vmul.f32 %v440, %v440
    %v602 = vmul.f32 %v442, %v442
    %v603 = vmul.f32 %v445, %v445
    %v604 = vadd.f32 %v555, %v556
    %v605 = vadd.f32 %v604, %v557
    %v606 = vadd.f32 %v605, %v558
    %v607 = vadd.f32 %v606, %v559
    %v608 = vadd.f32 %v607, %v560
    %v609 = vadd.f32 %v608, %v561
    %v610 = vadd.f32 %v609, %v562
    %v611 = vadd.f32 %v610, %v563
    %v612 = vadd.f32 %v611, %v564
    %v613 = vadd.f32 %v612, %v565
    %v614 = vadd.f32 %v613, %v566
    %v615 = vadd.f32 %v614, %v567
    %v616 = vadd.f32 %v615, %v568
    %v617 = vadd.f32 %v616, %v569
    %v618 = vadd.f32 %v617, %v570
    %v619 = vadd.f32 %v618, %v571
    %v620 = vadd.f32 %v619, %v572
    %v621 = vadd.f32 %v620, %v573
    %v622 = vadd.f32 %v621, %v574
    %v623 = vadd.f32 %v622, %v575
    %v624 = vadd.f32 %v623, %v576
    %v625 = vadd.f32 %v624, %v577
    %v626 = vadd.f32 %v625, %v578
    %v627 = vadd.f32 %v626, %v579
    %v628 = vadd.f32 %v627, %v580
    %v629 = vadd.f32 %v628, %v581
    %v630 = vadd.f32 %v629, %v582
    %v631 = vadd.f32 %v630, %v583
    %v632 = vadd.f32 %v631, %v584
    %v633 = vadd.f32 %v632, %v585
    %v634 = vadd.f32 %v633, %v586
    %v635 = vadd.f32 %v634, %v587
    %v636 = vadd.f32 %v635, %v588
    %v637 = vadd.f32 %v636, %v589
    %v638 = vadd.f32 %v637, %v590
    %v639 = vadd.f32 %v638, %v591
    %v640 = vadd.f32 %v639, %v592
    %v641 = vadd.f32 %v640, %v593
    %v642 = vadd.f32 %v641, %v594
    %v643 = vadd.f32 %v642, %v595
    %v644 = vadd.f32 %v643, %v596
    %v645 = vadd.f32 %v644, %v597
    %v646 = vadd.f32 %v645, %v598
    %v647 = vadd.f32 %v646, %v599
    %v648 = vadd.f32 %v647, %v600
    %v649 = vadd.f32 %v648, %v601
    %v650 = vadd.f32 %v649, %v602
    %v651 = vadd.f32 %v650, %v603
    %v652 = vrot.slane %v651, 4
    %v653 = vadd.f32 %v651, %v652
    %v654 = vrot.slane %v653, 2
    %v655 = vadd.f32 %v653, %v654
    %v656 = vrot.slane %v655, 1
    %v657 = vadd.f32 %v655, %v656
    %v658 = vadd.f32 %v554, %v657
    %659 = vst [vmem:[#allocation10] sm:$0x1] %v658
    // Predicated region
    $region22: #{tpu_custom_call.1} parent=1 // pred_check
      _
    $region23: #{tpu_custom_call.1} parent=1 // pred_check_branch
      %661 = sbr.rel (0) target = $region25
    $region24: #{tpu_custom_call.1} parent=1 // pred_region
      %663 = vsyncadd [#allocation4], 0
      %s664 = sshll.u32 [#allocation7], 4
      %s665 = int_to_ptr.vmem [resolvable:$true] %s664
      %s666 = sshll.u32 %s2, 4
      %s667 = int_to_ptr.hbm [resolvable:$true] %s666
      %672 = dma.vmem_to_hbm [thread:$0]  %s665, 6272, %s667, [#allocation4], 128, 128, 8
    $region25: #{tpu_custom_call.1} parent=1 // pred_fallthru
      _
    // Predicated region
    $region26: #{tpu_custom_call.1} parent=1 // pred_check
      _
    $region27: #{tpu_custom_call.1} parent=1 // pred_check_branch
      %674 = sbr.rel (0) target = $region29
    $region28: #{tpu_custom_call.1} parent=1 // pred_region
      %676 = vsyncadd [#allocation9], 0
      %s678 = sshll.u32 [#allocation8], 4
      %s679 = int_to_ptr.vmem [resolvable:$true] %s678
      %s680 = sshll.u32 %s3, 4
      %s681 = int_to_ptr.hbm [resolvable:$true] %s680
      %683 = dma.vmem_to_hbm [thread:$0]  %s679, 16, %s681, [#allocation9]
    $region29: #{tpu_custom_call.1} parent=1 // pred_fallthru
      _
    // Predicated region
    $region30: #{tpu_custom_call.1} parent=1 // pred_check
      _
    $region31: #{tpu_custom_call.1} parent=1 // pred_check_branch
      %685 = sbr.rel (0) target = $region33
    $region32: #{tpu_custom_call.1} parent=1 // pred_region
      %687 = vsyncadd [#allocation9], 0
      %s689 = sshll.u32 [#allocation10], 4
      %s690 = int_to_ptr.vmem [resolvable:$true] %s689
      %s691 = sshll.u32 %s4, 4
      %s692 = int_to_ptr.hbm [resolvable:$true] %s691
      %694 = dma.vmem_to_hbm [thread:$0]  %s690, 16, %s692, [#allocation9]
    $region33: #{tpu_custom_call.1} parent=1 // pred_fallthru
      _
    // Predicated region
    $region34: #{tpu_custom_call.1} parent=1 // pred_check
      _
    $region35: #{tpu_custom_call.1} parent=1 // pred_check_branch
      %696 = sbr.rel (0) target = $region37
    $region36: #{tpu_custom_call.1} parent=1 // pred_region
      %698 = dma.done [#allocation4], 6272
    $region37: #{tpu_custom_call.1} parent=1 // pred_fallthru
      _
    // Predicated region
    $region38: #{tpu_custom_call.1} parent=1 // pred_check
      _
    $region39: #{tpu_custom_call.1} parent=1 // pred_check_branch
      %700 = sbr.rel (0) target = $region41
    $region40: #{tpu_custom_call.1} parent=1 // pred_region
      %702 = dma.done [#allocation9], 16
    $region41: #{tpu_custom_call.1} parent=1 // pred_fallthru
      _
    // Predicated region
    $region42: #{tpu_custom_call.1} parent=1 // pred_check
      _
    $region43: #{tpu_custom_call.1} parent=1 // pred_check_branch
      %704 = sbr.rel (0) target = $region45
    $region44: #{tpu_custom_call.1} parent=1 // pred_region
      %706 = dma.done [#allocation9], 16
    $region45: #{tpu_custom_call.1} parent=1 // pred_fallthru
      _
    %707 = vsyncpa [#allocation3], 1
    %708 = vsyncpa [#allocation6], 1
    %709 = vsyncpa [#allocation4], 1
    %710 = vsyncpa [#allocation9], 1

</llo_original>
